<compile_context>
chip_gen: v7x
topology: tpu7x:2x2x1
jax: 0.10.0
libtpu: 0.0.40
codegen_flags: <defaults>
</compile_context>

<pallas_src>
import jax
import jax.numpy as jnp
from jax import lax
from jax.experimental import pallas as pl
from jax.experimental.pallas import tpu as pltpu

_CHUNK = 512  # inner lane-chunk width (keeps h1/h2 at ~12 vregs each)


def _round_up(n, m):
    return ((n + m - 1) // m) * m


def _mlp_kernel(x_ref, w1_ref, b1_ref, w2_ref, b2_ref, w3_ref, b3_ref, o_ref):
    # x_ref: (2, block_n) -- features on sublanes, batch on lanes.
    block_n = x_ref.shape[1]
    chunk = min(_CHUNK, block_n)

    # Hoist the (tiny, resident) parameter loads out of the chunk loop.
    w1a = w1_ref[:, 0:1]            # (20, 1)
    w1b = w1_ref[:, 1:2]            # (20, 1)
    b1 = b1_ref[...]                # (20, 1)
    w2 = w2_ref[...]                # (20, 20)
    b2 = b2_ref[...]                # (20, 1)
    w3 = w3_ref[...]                # (20, 1)  == layer3.weight.T
    b3 = b3_ref[...]                # (1, 1)

    def process(start, width):
        xs = x_ref[:, pl.ds(start, width)]              # (2, width)
        x0 = xs[0:1, :]
        x1 = xs[1:2, :]
        # Layer 1 (in=2): two broadcast FMAs on the VPU, no MXU.
        h1 = jnp.maximum(w1a * x0 + w1b * x1 + b1, 0.0)  # (20, width)
        # Layer 2 (20x20): MXU matmul, f32 accumulation.
        h2 = jnp.dot(w2, h1, preferred_element_type=jnp.float32) + b2
        h2 = jnp.maximum(h2, 0.0)                        # (20, width)
        # Layer 3 (out=1): weighted sublane reduction (VPU/XLU), no MXU.
        out = jnp.sum(w3 * h2, axis=0, keepdims=True) + b3  # (1, width)
        o_ref[:, pl.ds(start, width)] = out.astype(o_ref.dtype)

    n_full = block_n // chunk
    rem = block_n - n_full * chunk

    def body(c, carry):
        process(pl.multiple_of(c * chunk, 128), chunk)
        return carry

    # Fully unrolled so the LLO scheduler sees the whole tile's work.
    lax.fori_loop(0, n_full, body, 0, unroll=True)

    if rem:  # static remainder chunk (block_n is a multiple of 128, not of 512)
        process(n_full * chunk, rem)


def moon_model_forward_lanes(x_t, params, *, block_target=8192):
    """Fused MoonModel forward on lane-dense input.

    x_t: (2, N) float32 (batch on lanes) -> (1, N) float32.
    """
    w1, b1, w2, b2, w3, b3 = params
    n = x_t.shape[1]
    lane_n = _round_up(max(n, 1), 128)

    # >= 2 grid steps when possible (v7x: shard tiles across both TCs), tile
    # capped at block_target lanes to amortize the fixed per-step overhead.
    num_steps = pl.cdiv(lane_n, block_target)
    if lane_n >= 256:
        num_steps = max(num_steps, 2)
    block_n = _round_up(pl.cdiv(lane_n, num_steps), 128)
    padded_n = block_n * pl.cdiv(lane_n, block_n)   # waste < 128 lanes/step
    grid = (padded_n // block_n,)

    if padded_n != n:
        x_t = jnp.pad(x_t, ((0, 0), (0, padded_n - n)))

    const = lambda i: (0, 0)  # weights resident across all grid steps
    out = pl.pallas_call(
        _mlp_kernel,
        out_shape=jax.ShapeDtypeStruct((1, padded_n), jnp.float32),
        grid=grid,
        in_specs=[
            pl.BlockSpec((2, block_n), lambda i: (0, i)),   # x tile
            pl.BlockSpec((20, 2), const),                   # w1 (out, in)
            pl.BlockSpec((20, 1), const),                   # b1
            pl.BlockSpec((20, 20), const),                  # w2 (out, in)
            pl.BlockSpec((20, 1), const),                   # b2
            pl.BlockSpec((20, 1), const),                   # w3 (= layer3.weight.T)
            pl.BlockSpec((1, 1), const),                    # b3
        ],
        out_specs=pl.BlockSpec((1, block_n), lambda i: (0, i)),
        compiler_params=pltpu.CompilerParams(
            dimension_semantics=("parallel",),
        ),
    )(x_t, w1, b1, w2, b2, w3, b3)

    return out[:, :n]


def moon_model_forward(x, params, *, block_target=8192):
    """PyTorch-layout wrapper: x (N, 2) float32 -> (N, 1) float32."""
    n = x.shape[0]
    out = moon_model_forward_lanes(x.T, params, block_target=block_target)
    return out[0, :].reshape(n, 1)


def init_params(key):
    """Deterministic params in PyTorch (out, in) orientation.

    layer3's weight (1, 20) is stored transposed as (20, 1) so the kernel's
    final layer is a plain sublane reduction.
    """
    k1, k2, k3, k4, k5, k6 = jax.random.split(key, 6)
    w1 = jax.random.normal(k1, (20, 2), jnp.float32) * 0.5
    b1 = jax.random.normal(k2, (20, 1), jnp.float32) * 0.1
    w2 = jax.random.normal(k3, (20, 20), jnp.float32) * 0.2
    b2 = jax.random.normal(k4, (20, 1), jnp.float32) * 0.1
    w3 = jax.random.normal(k5, (20, 1), jnp.float32) * 0.2   # layer3.weight.T
    b3 = jax.random.normal(k6, (1, 1), jnp.float32) * 0.1
    return (w1, b1, w2, b2, w3, b3)


def reference_forward(x, params):
    """Pure-JAX reference matching torch.nn.Linear semantics (y = x @ W.T + b)."""
    w1, b1, w2, b2, w3, b3 = params
    h1 = jnp.maximum(x @ w1.T + b1.T, 0.0)
    h2 = jnp.maximum(h1 @ w2.T + b2.T, 0.0)
    return h2 @ w3 + b3


if __name__ == "__main__":
    key = jax.random.PRNGKey(0)
    pkey, xkey, xkey2 = jax.random.split(key, 3)
    params = init_params(pkey)

    # Small batch of 2-D "moons"-style inputs: (N, 2)
    x = jax.random.normal(xkey, (8, 2), jnp.float32)
    out = jax.block_until_ready(moon_model_forward(x, params))
    ref = reference_forward(x, params)
    assert out.shape == (8, 1)
    assert jnp.allclose(out, ref, atol=1e-4, rtol=1e-4)

    # Second check exercises the multi-step grid, tail padding and the
    # remainder chunk path (N=1200 -> block_n=640 = 512 + 128).
    x2 = jax.random.normal(xkey2, (1200, 2), jnp.float32)
    out2 = jax.block_until_ready(moon_model_forward(x2, params, block_target=8192))
    ref2 = reference_forward(x2, params)
    assert out2.shape == (1200, 1)
    assert jnp.allclose(out2, ref2, atol=1e-4, rtol=1e-4)

    print("KERNEL_OK")
</pallas_src>

<mosaic_0001>
module attributes {stable_mosaic.version = 11 : i64} {
  func.func @_mlp_kernel(%arg0: i32, %arg1: memref<2x128xf32, #tpu.memory_space<vmem>>, %arg2: memref<20x2xf32, #tpu.memory_space<vmem>>, %arg3: memref<20x1xf32, #tpu.memory_space<vmem>>, %arg4: memref<20x20xf32, #tpu.memory_space<vmem>>, %arg5: memref<20x1xf32, #tpu.memory_space<vmem>>, %arg6: memref<20x1xf32, #tpu.memory_space<vmem>>, %arg7: memref<1x1xf32, #tpu.memory_space<vmem>>, %arg8: memref<1x128xf32, #tpu.memory_space<vmem>>) attributes {dimension_semantics = [#tpu.dimension_semantics<parallel>], iteration_bounds = array<i64: 1>, scalar_prefetch = 0 : i64, scratch_operands = 0 : i64, tpu.core_type = #tpu.core_type<tc>, window_params = [{transform_indices = @transform_0, window_bounds = array<i64: 2, 128>}, {pipeline_mode = #tpu.pipeline_mode<synchronous>, transform_indices = @transform_1, window_bounds = array<i64: 20, 2>}, {pipeline_mode = #tpu.pipeline_mode<synchronous>, transform_indices = @transform_2, window_bounds = array<i64: 20, 1>}, {pipeline_mode = #tpu.pipeline_mode<synchronous>, transform_indices = @transform_3, window_bounds = array<i64: 20, 20>}, {pipeline_mode = #tpu.pipeline_mode<synchronous>, transform_indices = @transform_4, window_bounds = array<i64: 20, 1>}, {pipeline_mode = #tpu.pipeline_mode<synchronous>, transform_indices = @transform_5, window_bounds = array<i64: 20, 1>}, {pipeline_mode = #tpu.pipeline_mode<synchronous>, transform_indices = @transform_6, window_bounds = array<i64: 1, 1>}, {transform_indices = @transform_7, window_bounds = array<i64: 1, 128>}]} {
    %c0 = arith.constant 0 : index
    %c0_0 = arith.constant 0 : index
    %0 = vector.load %arg2[%c0, %c0_0] : memref<20x2xf32, #tpu.memory_space<vmem>>, vector<20x1xf32>
    %c0_1 = arith.constant 0 : index
    %c1 = arith.constant 1 : index
    %1 = vector.load %arg2[%c0_1, %c1] : memref<20x2xf32, #tpu.memory_space<vmem>>, vector<20x1xf32>
    %c0_2 = arith.constant 0 : index
    %c0_3 = arith.constant 0 : index
    %2 = vector.load %arg3[%c0_2, %c0_3] : memref<20x1xf32, #tpu.memory_space<vmem>>, vector<20x1xf32>
    %c0_4 = arith.constant 0 : index
    %c0_5 = arith.constant 0 : index
    %3 = vector.load %arg4[%c0_4, %c0_5] : memref<20x20xf32, #tpu.memory_space<vmem>>, vector<20x20xf32>
    %c0_6 = arith.constant 0 : index
    %c0_7 = arith.constant 0 : index
    %4 = vector.load %arg5[%c0_6, %c0_7] : memref<20x1xf32, #tpu.memory_space<vmem>>, vector<20x1xf32>
    %c0_8 = arith.constant 0 : index
    %c0_9 = arith.constant 0 : index
    %5 = vector.load %arg6[%c0_8, %c0_9] : memref<20x1xf32, #tpu.memory_space<vmem>>, vector<20x1xf32>
    %c0_10 = arith.constant 0 : index
    %c0_11 = arith.constant 0 : index
    %6 = vector.load %arg7[%c0_10, %c0_11] : memref<1x1xf32, #tpu.memory_space<vmem>>, vector<1x1xf32>
    %c0_i32 = arith.constant 0 : i32
    %c128_i32 = arith.constant 128 : i32
    %7 = arith.muli %c0_i32, %c128_i32 : i32
    %8 = tpu.assume_multiple %7, 128 : i32
    %c0_12 = arith.constant 0 : index
    %9 = arith.index_cast %8 : i32 to index
    %10 = vector.load %arg1[%c0_12, %9] : memref<2x128xf32, #tpu.memory_space<vmem>>, vector<2x128xf32>
    %11 = vector.extract_strided_slice %10 {offsets = [0, 0], sizes = [1, 128], strides = [1, 1]} : vector<2x128xf32> to vector<1x128xf32>
    %12 = vector.extract_strided_slice %10 {offsets = [1, 0], sizes = [1, 128], strides = [1, 1]} : vector<2x128xf32> to vector<1x128xf32>
    %13 = vector.broadcast %0 : vector<20x1xf32> to vector<20x128xf32>
    %14 = vector.broadcast %11 : vector<1x128xf32> to vector<20x128xf32>
    %15 = arith.mulf %13, %14 : vector<20x128xf32>
    %16 = vector.broadcast %1 : vector<20x1xf32> to vector<20x128xf32>
    %17 = vector.broadcast %12 : vector<1x128xf32> to vector<20x128xf32>
    %18 = arith.mulf %16, %17 : vector<20x128xf32>
    %19 = arith.addf %15, %18 : vector<20x128xf32>
    %20 = vector.broadcast %2 : vector<20x1xf32> to vector<20x128xf32>
    %21 = arith.addf %19, %20 : vector<20x128xf32>
    %cst = arith.constant 0.000000e+00 : f32
    %22 = vector.broadcast %cst : f32 to vector<20x128xf32>
    %23 = arith.maximumf %21, %22 : vector<20x128xf32>
    %cst_13 = arith.constant dense<0.000000e+00> : vector<20x128xf32>
    %24 = tpu.matmul %3, %23, %cst_13 {dimension_numbers = #tpu.dot_dimension_numbers<[1], [0], [0], [1], [0, 0, 1, 1], [], []>} : vector<20x20xf32>, vector<20x128xf32>, vector<20x128xf32> -> vector<20x128xf32>
    %25 = vector.broadcast %4 : vector<20x1xf32> to vector<20x128xf32>
    %26 = arith.addf %24, %25 : vector<20x128xf32>
    %cst_14 = arith.constant 0.000000e+00 : f32
    %27 = vector.broadcast %cst_14 : f32 to vector<20x128xf32>
    %28 = arith.maximumf %26, %27 : vector<20x128xf32>
    %29 = vector.broadcast %5 : vector<20x1xf32> to vector<20x128xf32>
    %30 = arith.mulf %29, %28 : vector<20x128xf32>
    %cst_15 = arith.constant dense<0.000000e+00> : vector<128xf32>
    %31 = vector.multi_reduction <add>, %30, %cst_15 [0] : vector<20x128xf32> to vector<128xf32>
    %32 = vector.shape_cast %31 : vector<128xf32> to vector<1x128xf32>
    %33 = vector.broadcast %6 : vector<1x1xf32> to vector<1x128xf32>
    %34 = arith.addf %32, %33 : vector<1x128xf32>
    %c0_16 = arith.constant 0 : index
    %35 = arith.index_cast %8 : i32 to index
    %36 = vector.load %arg8[%c0_16, %35] : memref<1x128xf32, #tpu.memory_space<vmem>>, vector<1x128xf32>
    tpu.vector_store %arg8[%c0_16, %35], %34 {strides = array<i32>} : memref<1x128xf32, #tpu.memory_space<vmem>>, vector<1x128xf32>,
    %c1_i32 = arith.constant 1 : i32
    return
  }
  func.func @transform_0(%arg0: i32) -> (i32, i32) {
    %c0_i32 = arith.constant 0 : i32
    %c0_i32_0 = arith.constant 0 : i32
    return %c0_i32, %arg0 : i32, i32
  }
  func.func @transform_1(%arg0: i32) -> (i32, i32) {
    %c0_i32 = arith.constant 0 : i32
    %c0_i32_0 = arith.constant 0 : i32
    %c0_i32_1 = arith.constant 0 : i32
    return %c0_i32, %c0_i32_0 : i32, i32
  }
  func.func @transform_2(%arg0: i32) -> (i32, i32) {
    %c0_i32 = arith.constant 0 : i32
    %c0_i32_0 = arith.constant 0 : i32
    %c0_i32_1 = arith.constant 0 : i32
    return %c0_i32, %c0_i32_0 : i32, i32
  }
  func.func @transform_3(%arg0: i32) -> (i32, i32) {
    %c0_i32 = arith.constant 0 : i32
    %c0_i32_0 = arith.constant 0 : i32
    %c0_i32_1 = arith.constant 0 : i32
    return %c0_i32, %c0_i32_0 : i32, i32
  }
  func.func @transform_4(%arg0: i32) -> (i32, i32) {
    %c0_i32 = arith.constant 0 : i32
    %c0_i32_0 = arith.constant 0 : i32
    %c0_i32_1 = arith.constant 0 : i32
    return %c0_i32, %c0_i32_0 : i32, i32
  }
  func.func @transform_5(%arg0: i32) -> (i32, i32) {
    %c0_i32 = arith.constant 0 : i32
    %c0_i32_0 = arith.constant 0 : i32
    %c0_i32_1 = arith.constant 0 : i32
    return %c0_i32, %c0_i32_0 : i32, i32
  }
  func.func @transform_6(%arg0: i32) -> (i32, i32) {
    %c0_i32 = arith.constant 0 : i32
    %c0_i32_0 = arith.constant 0 : i32
    %c0_i32_1 = arith.constant 0 : i32
    return %c0_i32, %c0_i32_0 : i32, i32
  }
  func.func @transform_7(%arg0: i32) -> (i32, i32) {
    %c0_i32 = arith.constant 0 : i32
    %c0_i32_0 = arith.constant 0 : i32
    return %c0_i32, %arg0 : i32, i32
  }
}

</mosaic_0001>

<llo_original>
// kernel: tpu_custom_call.1
$region0: #{tpu_custom_call.1}
  #allocation0 [shape = 'u32[]', space=smem, size = 0x4, offset = 0x4, fixed_abs, tag = 'smem constant byte address 0x4 - core index']
  #allocation1 [shape = 'u32[144,128]{1,0:T(1,128)}', space=vmem, size = 0x12000, scoped, tag = 'internal scratch']
  #allocation2 [shape = 'f32[1,1]{1,0:T(1,128)S(1)}', space=vmem, size = 0x200, scoped, tag = 'scoped memory for tpu_custom_call.1']
  %s0 = inlined_call_operand.vmem [shape: f32[2,128], index: 0, kind: input, shape index: {}]
  %s1 = inlined_call_operand.vmem [shape: f32[20,2], index: 1, kind: input, shape index: {}]
  %s2 = inlined_call_operand.vmem [shape: f32[20,1], index: 2, kind: input, shape index: {}]
  %s3 = inlined_call_operand.vmem [shape: f32[20,20], index: 3, kind: input, shape index: {}]
  %s4 = inlined_call_operand.vmem [shape: f32[20,1], index: 4, kind: input, shape index: {}]
  %s5 = inlined_call_operand.vmem [shape: f32[20,1], index: 5, kind: input, shape index: {}]
  %s6 = inlined_call_operand.<no memory space> [shape: f32[1,1], index: 6, kind: input, shape index: {}]
  %s7 = inlined_call_operand.hbm [shape: f32[1,128], index: 7, kind: output, shape index: {}]
  %s8 = sld [smem:[#allocation0]]
  $region38: #{tpu_custom_call.1} parent=0
    _
  %s10 = ssub.s32 1, %s8
  %s11 = scalar_select 0, %s10, %s8
  %v12 = vstv %s6
  %13 = vst [vmem:[#allocation2] sm:$0x1] %v12
  $region1: #{tpu_custom_call.1} parent=0
    #allocation3 [shape = 'u8[512]{0}', space=vmem, size = 0x400, scoped, tag = 'output window, operand 0, single buffered']
    #allocation4 [shape = 's32[1]{0}', space=sflag, size = 0x4, scoped, tag = 'scoped memory for tpu_custom_call.1']
    %14 = vsyncpa [#allocation4], 0
    // Predicated region
    $region2: #{tpu_custom_call.1} parent=1 // pred_check
      _
    $region3: #{tpu_custom_call.1} parent=1 // pred_check_branch
      %16 = sbr.rel (0) target = $region5
    $region4: #{tpu_custom_call.1} parent=1 // pred_region
      _
    $region5: #{tpu_custom_call.1} parent=1 // pred_fallthru
      _
    // Predicated region
    $region6: #{tpu_custom_call.1} parent=1 // pred_check
      _
    $region7: #{tpu_custom_call.1} parent=1 // pred_check_branch
      %18 = sbr.rel (0) target = $region9
    $region8: #{tpu_custom_call.1} parent=1 // pred_region
      _
    $region9: #{tpu_custom_call.1} parent=1 // pred_fallthru
      _
    // Predicated region
    $region10: #{tpu_custom_call.1} parent=1 // pred_check
      _
    $region11: #{tpu_custom_call.1} parent=1 // pred_check_branch
      %20 = sbr.rel (0) target = $region13
    $region12: #{tpu_custom_call.1} parent=1 // pred_region
      _
    $region13: #{tpu_custom_call.1} parent=1 // pred_fallthru
      _
    // Predicated region
    $region14: #{tpu_custom_call.1} parent=1 // pred_check
      _
    $region15: #{tpu_custom_call.1} parent=1 // pred_check_branch
      %22 = sbr.rel (0) target = $region17
    $region16: #{tpu_custom_call.1} parent=1 // pred_region
      _
    $region17: #{tpu_custom_call.1} parent=1 // pred_fallthru
      _
    // Predicated region
    $region18: #{tpu_custom_call.1} parent=1 // pred_check
      _
    $region19: #{tpu_custom_call.1} parent=1 // pred_check_branch
      %24 = sbr.rel (0) target = $region21
    $region20: #{tpu_custom_call.1} parent=1 // pred_region
      _
    $region21: #{tpu_custom_call.1} parent=1 // pred_fallthru
      _
    // Predicated region
    $region22: #{tpu_custom_call.1} parent=1 // pred_check
      _
    $region23: #{tpu_custom_call.1} parent=1 // pred_check_branch
      %26 = sbr.rel (0) target = $region25
    $region24: #{tpu_custom_call.1} parent=1 // pred_region
      _
    $region25: #{tpu_custom_call.1} parent=1 // pred_fallthru
      _
    // Predicated region
    $region26: #{tpu_custom_call.1} parent=1 // pred_check
      _
    $region27: #{tpu_custom_call.1} parent=1 // pred_check_branch
      %28 = sbr.rel (0) target = $region29
    $region28: #{tpu_custom_call.1} parent=1 // pred_region
      _
    $region29: #{tpu_custom_call.1} parent=1 // pred_fallthru
      _
    %v29 = vld [vmem:[%s1] sm:$0xff]
    %v30 = vld [vmem:[%s1 + $0x8] sm:$0xff]
    %v31 = vld [vmem:[%s1 + $0x10] sm:$0xf]
    %v32 = vld [vmem:[%s2] sm:$0xff]
    %v33 = vld [vmem:[%s2 + $0x8] sm:$0xff]
    %v34 = vld [vmem:[%s2 + $0x10] sm:$0xf]
    %v35 = vld [vmem:[%s3] sm:$0xff]
    %v36 = vld [vmem:[%s3 + $0x8] sm:$0xff]
    %v37 = vld [vmem:[%s3 + $0x10] sm:$0xf]
    %v38 = vld [vmem:[%s4] sm:$0xff]
    %v39 = vld [vmem:[%s4 + $0x8] sm:$0xff]
    %v40 = vld [vmem:[%s4 + $0x10] sm:$0xf]
    %v41 = vld [vmem:[%s5] sm:$0xff]
    %v42 = vld [vmem:[%s5 + $0x8] sm:$0xff]
    %v43 = vld [vmem:[%s5 + $0x10] sm:$0xf]
    %v44 = vld [vmem:[#allocation2] sm:$0x1]
    %v45 = vld [vmem:[%s0] sm:$0x3]
    %47 = vset.pattern.permute.xlu0 0
    %48 = vperm.xlu0 %47, %v29
    %v49 = vpop.permute.xlu0 %48
    %52 = vset.pattern.permute.xlu0 0
    %53 = vperm.xlu0 %52, %v30
    %v54 = vpop.permute.xlu0 %53
    %57 = vset.pattern.permute.xlu0 0
    %58 = vperm.xlu0 %57, %v31
    %v59 = vpop.permute.xlu0 %58
    %v61 = vlaneseq
    %v62 = vshrl.u32 %v61, 7
    %v63 = vsub.s32 0, %v62
    %v64 = vrot.slane %v45, %v63
    %v65 = vmul.f32 %v49, %v64
    %v66 = vmul.f32 %v54, %v64
    %v67 = vmul.f32 %v59, %v64
    %68 = vset.pattern.permute.xlu0 1
    %69 = vperm.xlu0 %68, %v29
    %v70 = vpop.permute.xlu0 %69
    %72 = vset.pattern.permute.xlu0 1
    %73 = vperm.xlu0 %72, %v30
    %v74 = vpop.permute.xlu0 %73
    %76 = vset.pattern.permute.xlu0 1
    %77 = vperm.xlu0 %76, %v31
    %v78 = vpop.permute.xlu0 %77
    %v80 = vlaneseq
    %v81 = vshrl.u32 %v80, 7
    %v82 = vsub.s32 1, %v81
    %v83 = vrot.slane %v45, %v82
    %v84 = vmul.f32 %v70, %v83
    %v85 = vmul.f32 %v74, %v83
    %v86 = vmul.f32 %v78, %v83
    %v87 = vadd.f32 %v65, %v84
    %v88 = vadd.f32 %v66, %v85
    %v89 = vadd.f32 %v67, %v86
    %91 = vset.pattern.permute.xlu0 0
    %92 = vperm.xlu0 %91, %v32
    %v93 = vpop.permute.xlu0 %92
    %96 = vset.pattern.permute.xlu0 0
    %97 = vperm.xlu0 %96, %v33
    %v98 = vpop.permute.xlu0 %97
    %101 = vset.pattern.permute.xlu0 0
    %102 = vperm.xlu0 %101, %v34
    %v103 = vpop.permute.xlu0 %102
    %v105 = vadd.f32 %v87, %v93
    %v106 = vadd.f32 %v88, %v98
    %v107 = vadd.f32 %v89, %v103
    %v108 = vmax.f32 %v105, 0.0
    %v109 = vmax.f32 %v106, 0.0
    %v110 = vmax.f32 %v107, 0.0
    %112 = vset.pattern.permute.xlu0 0
    %113 = vperm.xlu0 %112, %v38
    %v114 = vpop.permute.xlu0 %113
    %117 = vset.pattern.permute.xlu0 0
    %118 = vperm.xlu0 %117, %v39
    %v119 = vpop.permute.xlu0 %118
    %122 = vset.pattern.permute.xlu0 0
    %123 = vperm.xlu0 %122, %v40
    %v124 = vpop.permute.xlu0 %123
    %vm126 = vcmask 162816
    %v128 = vsel %vm126, %v35, 0
    %v131 = vsel %vm126, %v36, 0
    %v134 = vsel %vm126, %v37, 0
    %vm136 = vcmask 1043456
    %v138 = vsel %vm136, %v110, 0
    %140 = vmatprep.subr.mxu0 0.0
    %141 = vmatpush1.msra.mxu0 %v108
    %142 = vmatprep.subr.mxu0 0.0
    %143 = vmatpush1.msra.mxu0 %v109
    %144 = vmatprep.subr.mxu0 0.0
    %145 = vmatpush1.msra.mxu0 %v138
    %146 = vmatprep.subr.mxu0 0.0
    %147 = vmatpush1.msra.mxu0 0.0
    %148 = vmatprep.subr.mxu0 0.0
    %149 = vmatpush1.msra.mxu0 0.0
    %150 = vmatprep.subr.mxu0 0.0
    %151 = vmatpush1.msra.mxu0 0.0
    %152 = vmatprep.subr.mxu0 0.0
    %153 = vmatpush1.msra.mxu0 0.0
    %154 = vmatprep.subr.mxu0 0.0
    %155 = vmatpush1.msra.mxu0 0.0
    %156 = vmatprep.subr.mxu0 0.0
    %157 = vmatpush1.msra.mxu0 0.0
    %158 = vmatprep.subr.mxu0 0.0
    %159 = vmatpush1.msra.mxu0 0.0
    %160 = vmatprep.subr.mxu0 0.0
    %161 = vmatpush1.msra.mxu0 0.0
    %162 = vmatprep.subr.mxu0 0.0
    %163 = vmatpush1.msra.mxu0 0.0
    %164 = vmatprep.subr.mxu0 0.0
    %165 = vmatpush1.msra.mxu0 0.0
    %166 = vmatprep.subr.mxu0 0.0
    %167 = vmatpush1.msra.mxu0 0.0
    %168 = vmatprep.subr.mxu0 0.0
    %169 = vmatpush1.msra.mxu0 0.0
    %170 = vmatprep.subr.mxu0 0.0
    %171 = vmatpush1.msra.mxu0 0.0
    %172 = vmatprep.subr.mxu0 0.0
    %173 = vmatpush1.msra.mxu0 0.0
    %174 = vmatprep.subr.mxu0 0.0
    %175 = vmatpush1.msra.mxu0 0.0
    %176 = vmatprep.subr.mxu0 0.0
    %177 = vmatpush1.msra.mxu0 0.0
    %178 = vmatprep.subr.mxu0 0.0
    %179 = vmatpush1.msra.mxu0 0.0
    %180 = vmatprep.subr.mxu0 0.0
    %181 = vmatpush1.msra.mxu0 0.0
    %182 = vmatprep.subr.mxu0 0.0
    %183 = vmatpush1.msra.mxu0 0.0
    %184 = vmatprep.subr.mxu0 0.0
    %185 = vmatpush1.msra.mxu0 0.0
    %186 = vmatprep.subr.mxu0 0.0
    %187 = vmatpush1.msra.mxu0 0.0
    %188 = vmatprep.subr.mxu0 0.0
    %189 = vmatpush1.msra.mxu0 0.0
    %190 = vmatprep.subr.mxu0 0.0
    %191 = vmatpush1.msra.mxu0 0.0
    %192 = vmatprep.subr.mxu0 0.0
    %193 = vmatpush1.msra.mxu0 0.0
    %194 = vmatprep.subr.mxu0 0.0
    %195 = vmatpush1.msra.mxu0 0.0
    %196 = vmatprep.subr.mxu0 0.0
    %197 = vmatpush1.msra.mxu0 0.0
    %198 = vmatprep.subr.mxu0 0.0
    %199 = vmatpush1.msra.mxu0 0.0
    %200 = vmatprep.subr.mxu0 0.0
    %201 = vmatpush1.msra.mxu0 0.0
    %202 = vmatprep.subr.mxu0 0.0
    %203 = vmatpush1.msra.mxu0 0.0
    %204 = vmatprep.mubr.f32.mxu0 0.0
    %205 = vmatmul.mubr.f32.gmra.mrb[0].mxu0 %v128
    %v206 = vpop.f32.mrb[0].mxu0
    %v207 = vadd.f32 %v114, %v206
    %v208 = vpop.f32.mrb[0].mxu0
    %209 = vmatprep.mubr.f32.mxu0 0.0
    %210 = vmatmul.mubr.f32.gmra.mrb[0].mxu0 %v131
    %v211 = vpop.f32.mrb[0].mxu0
    %v212 = vadd.f32 %v119, %v211
    %v213 = vpop.f32.mrb[0].mxu0
    %214 = vmatprep.mubr.f32.mxu0 0.0
    %215 = vmatmul.mubr.f32.gmra.mrb[0].mxu0 %v134
    %v216 = vpop.f32.mrb[0].mxu0
    %v217 = vadd.f32 %v124, %v216
    %v218 = vpop.f32.mrb[0].mxu0
    %219 = vdwg.mxu0
    %v220 = vmax.f32 %v207, 0.0
    %v221 = vmax.f32 %v212, 0.0
    %v222 = vmax.f32 %v217, 0.0
    %224 = vset.pattern.permute.xlu0 0
    %225 = vperm.xlu0 %224, %v41
    %v226 = vpop.permute.xlu0 %225
    %229 = vset.pattern.permute.xlu0 0
    %230 = vperm.xlu0 %229, %v42
    %v231 = vpop.permute.xlu0 %230
    %234 = vset.pattern.permute.xlu0 0
    %235 = vperm.xlu0 %234, %v43
    %v236 = vpop.permute.xlu0 %235
    %v238 = vmul.f32 %v226, %v220
    %v239 = vmul.f32 %v231, %v221
    %v240 = vmul.f32 %v236, %v222
    %v241 = vadd.f32 %v238, %v239
    %v242 = vsel %vm136, %v240, 0.0
    %v243 = vadd.f32 %v241, %v242
    %v244 = vrot.slane %v243, 4
    %v245 = vadd.f32 %v243, %v244
    %v246 = vrot.slane %v245, 2
    %v247 = vadd.f32 %v245, %v246
    %v248 = vrot.slane %v247, 1
    %v249 = vadd.f32 %v247, %v248
    %251 = vset.pattern.permute.xlu0 0
    %252 = vperm.xlu0 %251, %v44
    %v253 = vpop.permute.xlu0 %252
    %v255 = vlaneseq
    %v256 = vshrl.u32 %v255, 7
    %v257 = vsub.s32 0, %v256
    %v258 = vrot.slane %v253, %v257
    %v259 = vadd.f32 %v249, %v258
    %260 = vst [vmem:[#allocation3] sm:$0x1] %v259
    // Predicated region
    $region30: #{tpu_custom_call.1} parent=1 // pred_check
      _
    $region31: #{tpu_custom_call.1} parent=1 // pred_check_branch
      %262 = sbr.rel (0) target = $region33
    $region32: #{tpu_custom_call.1} parent=1 // pred_region
      %s264 = ssub.s32 16, 16
      %265 = vsyncadd [#allocation4], %s264
      %s267 = sshll.u32 [#allocation3], 4
      %s268 = int_to_ptr.vmem [resolvable:$true] %s267
      %270 = dma.vmem_to_hbm [thread:$0]  %s268, 16, %s7, [#allocation4]
    $region33: #{tpu_custom_call.1} parent=1 // pred_fallthru
      _
    // Predicated region
    $region34: #{tpu_custom_call.1} parent=1 // pred_check
      _
    $region35: #{tpu_custom_call.1} parent=1 // pred_check_branch
      %272 = sbr.rel (0) target = $region37
    $region36: #{tpu_custom_call.1} parent=1 // pred_region
      %273 = dma.done [#allocation4], 16
    $region37: #{tpu_custom_call.1} parent=1 // pred_fallthru
      _
    %274 = vsyncpa [#allocation4], 1

</llo_original>
